<compile_context>
chip_gen: v5e
topology: v5e:2x2
jax: 0.10.0
libtpu: 0.0.40
codegen_flags: <defaults>
</compile_context>

<pallas_src>
import functools

import jax
import jax.numpy as jnp
from jax.experimental import pallas as pl
from jax.experimental.pallas import tpu as pltpu


def _round_up(x, m):
    return ((x + m - 1) // m) * m


def sage_kernel(src_ref, dst_ref, w_ref, b_ref, o_ref, *, fanout, feat_dim, folded):
    # src_ref: (tm, D)                     self features
    # dst_ref: (tm, F*D)                   lane-dense flattened neighbor features
    # w_ref:   (D + F*D, O) if folded      [W_src ; tile(W_dst, F)/F]
    #          (2*D, O)     otherwise      [W_src ; W_dst]
    # b_ref:   (1, O) f32 bias
    # o_ref:   (tm, O)
    D = feat_dim
    # NOTE: D should be a multiple of 8 so the w_ref row slices stay sublane-aligned.
    acc = jnp.dot(src_ref[...], w_ref[:D, :], preferred_element_type=jnp.float32)
    if folded:
        # Fanout mean folded into the (F-replicated, 1/F-scaled) weight: extra MXU K-depth.
        acc = acc + jnp.dot(dst_ref[...], w_ref[D:, :],
                            preferred_element_type=jnp.float32)
    else:
        # In-kernel fanout mean: F-1 cheap VPU adds over static lane chunks, then one
        # K=D MXU dot. Keeps MXU work = 2*M*2D*O and the resident weight at (2D, O).
        dsum = dst_ref[:, 0:D].astype(jnp.float32)
        for f in range(1, fanout):
            dsum = dsum + dst_ref[:, f * D:(f + 1) * D].astype(jnp.float32)
        dmean = dsum * (1.0 / fanout)
        acc = acc + jnp.dot(dmean, w_ref[D:, :].astype(jnp.float32),
                            preferred_element_type=jnp.float32)
    o_ref[...] = (acc + b_ref[...]).astype(o_ref.dtype)


def sage_layer_forward(src, dst, weight, bias, *,
                       fold_mean_into_weight=None,
                       target_step_bytes=4 * 1024 * 1024):
    """src: (B, N, D) self features, dst: (B, N, F, D) neighbor features.
    weight: (2*D, O) of the aggregator's Linear(2*D, O); bias: (O,)."""
    B, N, D = src.shape
    F = dst.shape[2]
    assert dst.shape == (B, N, F, D)
    O = weight.shape[1]
    assert weight.shape == (2 * D, O)
    M = B * N

    in_item = jnp.dtype(src.dtype).itemsize
    out_item = in_item
    w_item = jnp.dtype(weight.dtype).itemsize

    # Only fold the mean into an F-replicated weight when the MXU has plenty of slack
    # (narrow operands and wide output); otherwise aggregate in-kernel (VPU).
    if fold_mean_into_weight is None:
        fold_mean_into_weight = (in_item <= 2) and (O >= 256)
    folded = bool(fold_mean_into_weight)

    # Lane-dense activation layouts (both reshapes are on contiguous memory -> free).
    src2 = src.reshape(M, D)
    dst2 = dst.reshape(M, F * D)

    if folded:
        w_src = weight[:D]
        w_dst = weight[D:]
        # dst_flat @ (tile(W_dst) / F) == mean(dst, -2) @ W_dst
        w_dst_rep = (jnp.tile(w_dst.astype(jnp.float32), (F, 1)) / float(F)).astype(weight.dtype)
        w_full = jnp.concatenate([w_src, w_dst_rep], axis=0)      # (D + F*D, O)
    else:
        w_full = weight                                           # (2*D, O)
    KW = w_full.shape[0]
    bias2 = bias.astype(jnp.float32).reshape(1, O)

    # ---- tile_m selection --------------------------------------------------
    sublane = {4: 8, 2: 16, 1: 32}.get(in_item, 8)

    # Degenerate tiny-M case only: pad a handful of rows so block <= array dims.
    if M < sublane:
        pad = sublane - M
        src2 = jnp.pad(src2, ((0, pad), (0, 0)))
        dst2 = jnp.pad(dst2, ((0, pad), (0, 0)))
    Mp = max(M, sublane)

    # HBM bytes streamed per M-row (src + dst in, out back).
    row_stream_bytes = (D + F * D) * in_item + O * out_item
    # VMEM bytes per M-row: double-buffered in/out tiles + f32 intermediates.
    row_vmem_bytes = 2 * row_stream_bytes + 4 * (O + D)
    weight_vmem = 2 * (KW * O * w_item + O * 4)     # resident weight + bias (2 buffers)

    try:
        vmem_cap = int(getattr(pltpu.get_tpu_info(), "vmem_capacity_bytes"))
    except Exception:
        vmem_cap = 64 * 1024 * 1024                 # conservative (v7x) fallback
    budget = int(vmem_cap * 0.6)

    tm = max(sublane, target_step_bytes // row_stream_bytes)          # amortize step overhead
    tm_vmem = max(sublane, (budget - weight_vmem) // row_vmem_bytes)  # fit VMEM budget
    tm = min(tm, tm_vmem)
    tm = min(tm, max(sublane, (Mp // sublane) * sublane))             # block <= array rows
    if Mp >= 2 * sublane:                                             # >= 2 grid steps (2 TCs on v7x)
        tm = min(tm, _round_up(-(-Mp // 2), sublane))
    tm = max(sublane, (tm // sublane) * sublane)                      # dtype sublane multiple

    grid = (pl.cdiv(Mp, tm),)

    vmem_needed = tm * row_vmem_bytes + weight_vmem
    vmem_limit = int(min(int(vmem_cap * 0.75),
                         max(vmem_needed + (8 << 20), 32 << 20)))

    flops = 2 * M * KW * O + (0 if folded else M * (F - 1) * D)
    cost = pl.CostEstimate(
        flops=int(flops),
        transcendentals=0,
        bytes_accessed=int(M * row_stream_bytes + KW * O * w_item + O * 4),
    )

    out = pl.pallas_call(
        functools.partial(sage_kernel, fanout=F, feat_dim=D, folded=folded),
        out_shape=jax.ShapeDtypeStruct((Mp, O), src.dtype),
        grid_spec=pltpu.PrefetchScalarGridSpec(
            num_scalar_prefetch=0,
            grid=grid,
            in_specs=[
                pl.BlockSpec((tm, D), lambda i: (i, 0)),
                pl.BlockSpec((tm, F * D), lambda i: (i, 0)),
                pl.BlockSpec((KW, O), lambda i: (0, 0)),   # resident weight
                pl.BlockSpec((1, O), lambda i: (0, 0)),    # resident bias
            ],
            out_specs=pl.BlockSpec((tm, O), lambda i: (i, 0)),
        ),
        compiler_params=pltpu.CompilerParams(
            dimension_semantics=("parallel",),
            vmem_limit_bytes=vmem_limit,
        ),
        cost_estimate=cost,
    )(src2, dst2, w_full, bias2)

    return out[:M].reshape(B, N, O)


def sage_layer_reference(src, dst, weight, bias):
    dst_mean = jnp.mean(dst.astype(jnp.float32), axis=-2)
    h = jnp.concatenate([src.astype(jnp.float32), dst_mean], axis=-1)
    return (h @ weight.astype(jnp.float32) + bias.astype(jnp.float32)).astype(src.dtype)


if __name__ == "__main__":
    input_dim = 32
    output_dim = 32
    B, N, F = 2, 8, 4          # batch, nodes per batch, fanout

    key = jax.random.PRNGKey(0)
    k_src, k_dst, k_w, k_b = jax.random.split(key, 4)

    src = jax.random.normal(k_src, (B, N, input_dim), dtype=jnp.float32)
    dst = jax.random.normal(k_dst, (B, N, F, input_dim), dtype=jnp.float32)

    # Deterministic parameter init (nn.Linear(2*input_dim, output_dim, bias=True) shapes).
    fan_in = 2 * input_dim
    bound = 1.0 / (fan_in ** 0.5)
    weight = jax.random.uniform(k_w, (2 * input_dim, output_dim),
                                minval=-bound, maxval=bound, dtype=jnp.float32)
    bias = jax.random.uniform(k_b, (output_dim,),
                              minval=-bound, maxval=bound, dtype=jnp.float32)

    ref = sage_layer_reference(src, dst, weight, bias)

    # Default path: in-kernel fanout mean (the one the heuristic picks for f32 / small O).
    out = jax.block_until_ready(sage_layer_forward(src, dst, weight, bias))
    assert out.shape == (B, N, output_dim)
    assert jnp.allclose(out, ref, atol=1e-4, rtol=1e-4)

    # Also exercise the folded (F-replicated weight) path so both code paths are validated.
    out2 = jax.block_until_ready(
        sage_layer_forward(src, dst, weight, bias, fold_mean_into_weight=True))
    assert jnp.allclose(out2, ref, atol=1e-4, rtol=1e-4)

    print("KERNEL_OK")
</pallas_src>

<mosaic_0001>
module attributes {stable_mosaic.version = 11 : i64} {
  func.func @sage_kernel(%arg0: i32, %arg1: memref<8x32xf32, #tpu.memory_space<vmem>>, %arg2: memref<8x128xf32, #tpu.memory_space<vmem>>, %arg3: memref<64x32xf32, #tpu.memory_space<vmem>>, %arg4: memref<1x32xf32, #tpu.memory_space<vmem>>, %arg5: memref<8x32xf32, #tpu.memory_space<vmem>>) attributes {dimension_semantics = [#tpu.dimension_semantics<parallel>], iteration_bounds = array<i64: 2>, scalar_prefetch = 0 : i64, scratch_operands = 0 : i64, tpu.core_type = #tpu.core_type<tc>, window_params = [{transform_indices = @transform_0, window_bounds = array<i64: 8, 32>}, {transform_indices = @transform_1, window_bounds = array<i64: 8, 128>}, {pipeline_mode = #tpu.pipeline_mode<synchronous>, transform_indices = @transform_2, window_bounds = array<i64: 64, 32>}, {pipeline_mode = #tpu.pipeline_mode<synchronous>, transform_indices = @transform_3, window_bounds = array<i64: 1, 32>}, {transform_indices = @transform_4, window_bounds = array<i64: 8, 32>}]} {
    %c0 = arith.constant 0 : index
    %c0_0 = arith.constant 0 : index
    %0 = vector.load %arg1[%c0, %c0_0] : memref<8x32xf32, #tpu.memory_space<vmem>>, vector<8x32xf32>
    %c0_1 = arith.constant 0 : index
    %c0_2 = arith.constant 0 : index
    %1 = vector.load %arg3[%c0_1, %c0_2] : memref<64x32xf32, #tpu.memory_space<vmem>>, vector<32x32xf32>
    %cst = arith.constant dense<0.000000e+00> : vector<8x32xf32>
    %2 = tpu.matmul %0, %1, %cst {dimension_numbers = #tpu.dot_dimension_numbers<[1], [0], [0], [1], [0, 0, 1, 1], [], []>} : vector<8x32xf32>, vector<32x32xf32>, vector<8x32xf32> -> vector<8x32xf32>
    %c0_3 = arith.constant 0 : index
    %c0_4 = arith.constant 0 : index
    %3 = vector.load %arg2[%c0_3, %c0_4] : memref<8x128xf32, #tpu.memory_space<vmem>>, vector<8x32xf32>
    %c0_5 = arith.constant 0 : index
    %c32 = arith.constant 32 : index
    %4 = vector.load %arg2[%c0_5, %c32] : memref<8x128xf32, #tpu.memory_space<vmem>>, vector<8x32xf32>
    %5 = arith.addf %3, %4 : vector<8x32xf32>
    %c0_6 = arith.constant 0 : index
    %c64 = arith.constant 64 : index
    %6 = vector.load %arg2[%c0_6, %c64] : memref<8x128xf32, #tpu.memory_space<vmem>>, vector<8x32xf32>
    %7 = arith.addf %5, %6 : vector<8x32xf32>
    %c0_7 = arith.constant 0 : index
    %c96 = arith.constant 96 : index
    %8 = vector.load %arg2[%c0_7, %c96] : memref<8x128xf32, #tpu.memory_space<vmem>>, vector<8x32xf32>
    %9 = arith.addf %7, %8 : vector<8x32xf32>
    %cst_8 = arith.constant 2.500000e-01 : f32
    %10 = vector.broadcast %cst_8 : f32 to vector<8x32xf32>
    %11 = arith.mulf %9, %10 : vector<8x32xf32>
    %c32_9 = arith.constant 32 : index
    %c0_10 = arith.constant 0 : index
    %12 = vector.load %arg3[%c32_9, %c0_10] : memref<64x32xf32, #tpu.memory_space<vmem>>, vector<32x32xf32>
    %cst_11 = arith.constant dense<0.000000e+00> : vector<8x32xf32>
    %13 = tpu.matmul %11, %12, %cst_11 {dimension_numbers = #tpu.dot_dimension_numbers<[1], [0], [0], [1], [0, 0, 1, 1], [], []>} : vector<8x32xf32>, vector<32x32xf32>, vector<8x32xf32> -> vector<8x32xf32>
    %14 = arith.addf %2, %13 : vector<8x32xf32>
    %c0_12 = arith.constant 0 : index
    %c0_13 = arith.constant 0 : index
    %15 = vector.load %arg4[%c0_12, %c0_13] : memref<1x32xf32, #tpu.memory_space<vmem>>, vector<1x32xf32>
    %16 = vector.broadcast %15 : vector<1x32xf32> to vector<8x32xf32>
    %17 = arith.addf %14, %16 : vector<8x32xf32>
    %c0_14 = arith.constant 0 : index
    %c0_15 = arith.constant 0 : index
    %18 = vector.load %arg5[%c0_14, %c0_15] : memref<8x32xf32, #tpu.memory_space<vmem>>, vector<8x32xf32>
    tpu.vector_store %arg5[%c0_14, %c0_15], %17 {strides = array<i32>} : memref<8x32xf32, #tpu.memory_space<vmem>>, vector<8x32xf32>,
    return
  }
  func.func @transform_0(%arg0: i32) -> (i32, i32) {
    %c0_i32 = arith.constant 0 : i32
    %c0_i32_0 = arith.constant 0 : i32
    return %arg0, %c0_i32 : i32, i32
  }
  func.func @transform_1(%arg0: i32) -> (i32, i32) {
    %c0_i32 = arith.constant 0 : i32
    %c0_i32_0 = arith.constant 0 : i32
    return %arg0, %c0_i32 : i32, i32
  }
  func.func @transform_2(%arg0: i32) -> (i32, i32) {
    %c0_i32 = arith.constant 0 : i32
    %c0_i32_0 = arith.constant 0 : i32
    %c0_i32_1 = arith.constant 0 : i32
    return %c0_i32, %c0_i32_0 : i32, i32
  }
  func.func @transform_3(%arg0: i32) -> (i32, i32) {
    %c0_i32 = arith.constant 0 : i32
    %c0_i32_0 = arith.constant 0 : i32
    %c0_i32_1 = arith.constant 0 : i32
    return %c0_i32, %c0_i32_0 : i32, i32
  }
  func.func @transform_4(%arg0: i32) -> (i32, i32) {
    %c0_i32 = arith.constant 0 : i32
    %c0_i32_0 = arith.constant 0 : i32
    return %arg0, %c0_i32 : i32, i32
  }
}

</mosaic_0001>

<llo_original>
// kernel: tpu_custom_call.1
$region0: #{tpu_custom_call.1}
  #allocation0 [shape = 'u32[]', space=smem, size = 0x4, offset = 0x4, fixed_abs, tag = 'smem constant byte address 0x4 - core index']
  #allocation1 [shape = 'u32[72,128]{1,0:T(1,128)}', space=vmem, size = 0x9000, scoped, tag = 'internal scratch']
  %s0 = inlined_call_operand.vmem [shape: f32[16,32], index: 0, kind: input, shape index: {}]
  %s1 = inlined_call_operand.vmem [shape: f32[16,128], index: 1, kind: input, shape index: {}]
  %s2 = inlined_call_operand.vmem [shape: f32[64,32], index: 2, kind: input, shape index: {}]
  %s3 = inlined_call_operand.vmem [shape: f32[1,32], index: 3, kind: input, shape index: {}]
  %s4 = inlined_call_operand.hbm [shape: f32[16,32], index: 4, kind: output, shape index: {}]
  %s5 = sld [smem:[#allocation0]]
  $region49: #{tpu_custom_call.1} parent=0
    _
  %s7 = ssub.s32 1, %s5
  %s8 = scalar_select 0, %s7, %s5
  $region1: #{tpu_custom_call.1} parent=0
    #allocation2 [shape = 'u8[8192]{0}', space=vmem, size = 0x2000, scoped, tag = 'output window, operand 0']
    #allocation3 [shape = 's32[2]{0}', space=sflag, size = 0x8, scoped, tag = 'scoped memory for tpu_custom_call.1']
    %9 = vsyncpa [#allocation3], 0
    %s10 = scalar_lea.sflag [#allocation3], 1
    %11 = vsyncpa %s10, 0
    loop: start=0, step=1, limit=4
    $region2: #{tpu_custom_call.1} parent=1 // loop_pre_header
      _
    $region3: #{tpu_custom_call.1} parent=1 // loop_header
      %s13 = sphi 0, %s17
      %p14 = scmp.ge.s32.totalorder %s13, 4
      %s23 = sphi 0, %s25
      %s26 = sphi 0, %s23
      %s27 = sphi 0, %s26
      %s43 = sphi 0, %s27
      %s49 = sphi 0, %s51
      %s52 = sphi 0, %s49
      %s53 = sphi 0, %s52
      %s69 = sphi 0, %s53
      %s73 = sphi 0, %s73
      %s75 = sphi 0, %s73
      %s76 = sphi 0, %s75
      %s90 = sphi 0, %s76
      %s94 = sphi 0, %s94
      %s96 = sphi 0, %s94
      %s97 = sphi 0, %s96
      %s111 = sphi 0, %s97
      %s117 = sphi 0, %s119
      %s120 = sphi 0, %s117
      %s121 = sphi 0, %s120
      %s137 = sphi 0, %s121
    $region4: #{tpu_custom_call.1} parent=1 // loop_header_branch
      %16 = sbr.rel (%p14) target = $region8
    $region5: #{tpu_custom_call.1} parent=1 // loop_body
      %s18 = ssub.s32 %s13, 1
      %s19 = ssub.s32 %s13, 2
      %s20 = sadd.s32 %s13, 1
      %s21 = ssub.s32 %s13, %s20
      %p22 = scmp.eq.s32.totalorder %s21, 0
      %s24 = sadd.s32 %s23, 1
      %s25 = scalar_select %p22, %s23, %s24
      %p28 = pneg %p22
      %p29 = scmp.eq.s32.totalorder %s13, 1
      %p30 = por %p28, %p29
      %p31 = scmp.ne.s32.totalorder %s23, %s26
      %p32 = scmp.eq.s32.totalorder %s13, 0
      %p33 = por %p31, %p32
      %p34 = scmp.ne.s32.totalorder %s23, %s26
      %p35 = scmp.eq.s32.totalorder %s18, 1
      %p36 = por %p34, %p35
      %p37 = scmp.ne.s32.totalorder %s26, %s27
      %p38 = scmp.eq.s32.totalorder %s18, 0
      %p39 = por %p37, %p38
      %p40 = scmp.ne.s32.totalorder %s26, %s27
      %p41 = scmp.eq.s32.totalorder %s19, 1
      %p42 = por %p40, %p41
      %p44 = scmp.ne.s32.totalorder %s27, %s43
      %p45 = scmp.eq.s32.totalorder %s19, 0
      %p46 = por %p44, %p45
      %s47 = ssub.s32 %s13, %s20
      %p48 = scmp.eq.s32.totalorder %s47, 0
      %s50 = sadd.s32 %s49, 1
      %s51 = scalar_select %p48, %s49, %s50
      %p54 = pneg %p48
      %p55 = scmp.eq.s32.totalorder %s13, 1
      %p56 = por %p54, %p55
      %p57 = scmp.ne.s32.totalorder %s49, %s52
      %p58 = scmp.eq.s32.totalorder %s13, 0
      %p59 = por %p57, %p58
      %p60 = scmp.ne.s32.totalorder %s49, %s52
      %p61 = scmp.eq.s32.totalorder %s18, 1
      %p62 = por %p60, %p61
      %p63 = scmp.ne.s32.totalorder %s52, %s53
      %p64 = scmp.eq.s32.totalorder %s18, 0
      %p65 = por %p63, %p64
      %p66 = scmp.ne.s32.totalorder %s52, %s53
      %p67 = scmp.eq.s32.totalorder %s19, 1
      %p68 = por %p66, %p67
      %p70 = scmp.ne.s32.totalorder %s53, %s69
      %p71 = scmp.eq.s32.totalorder %s19, 0
      %p72 = por %p70, %p71
      %s74 = sadd.s32 %s73, 1
      %p77 = scmp.eq.s32.totalorder %s13, 1
      %p78 = scmp.ne.s32.totalorder %s73, %s75
      %p79 = scmp.eq.s32.totalorder %s13, 0
      %p80 = por %p78, %p79
      %p81 = scmp.ne.s32.totalorder %s73, %s75
      %p82 = scmp.eq.s32.totalorder %s18, 1
      %p83 = por %p81, %p82
      %p84 = scmp.ne.s32.totalorder %s75, %s76
      %p85 = scmp.eq.s32.totalorder %s18, 0
      %p86 = por %p84, %p85
      %p87 = scmp.ne.s32.totalorder %s75, %s76
      %p88 = scmp.eq.s32.totalorder %s19, 1
      %p89 = por %p87, %p88
      %p91 = scmp.ne.s32.totalorder %s76, %s90
      %p92 = scmp.eq.s32.totalorder %s19, 0
      %p93 = por %p91, %p92
      %s95 = sadd.s32 %s94, 1
      %p98 = scmp.eq.s32.totalorder %s13, 1
      %p99 = scmp.ne.s32.totalorder %s94, %s96
      %p100 = scmp.eq.s32.totalorder %s13, 0
      %p101 = por %p99, %p100
      %p102 = scmp.ne.s32.totalorder %s94, %s96
      %p103 = scmp.eq.s32.totalorder %s18, 1
      %p104 = por %p102, %p103
      %p105 = scmp.ne.s32.totalorder %s96, %s97
      %p106 = scmp.eq.s32.totalorder %s18, 0
      %p107 = por %p105, %p106
      %p108 = scmp.ne.s32.totalorder %s96, %s97
      %p109 = scmp.eq.s32.totalorder %s19, 1
      %p110 = por %p108, %p109
      %p112 = scmp.ne.s32.totalorder %s97, %s111
      %p113 = scmp.eq.s32.totalorder %s19, 0
      %p114 = por %p112, %p113
      %s115 = ssub.s32 %s13, %s20
      %p116 = scmp.eq.s32.totalorder %s115, 0
      %s118 = sadd.s32 %s117, 1
      %s119 = scalar_select %p116, %s117, %s118
      %p122 = pneg %p116
      %p123 = scmp.eq.s32.totalorder %s13, 1
      %p124 = por %p122, %p123
      %p125 = scmp.ne.s32.totalorder %s117, %s120
      %p126 = scmp.eq.s32.totalorder %s13, 0
      %p127 = por %p125, %p126
      %p128 = scmp.ne.s32.totalorder %s117, %s120
      %p129 = scmp.eq.s32.totalorder %s18, 1
      %p130 = por %p128, %p129
      %p131 = scmp.ne.s32.totalorder %s120, %s121
      %p132 = scmp.eq.s32.totalorder %s18, 0
      %p133 = por %p131, %p132
      %p134 = scmp.ne.s32.totalorder %s120, %s121
      %p135 = scmp.eq.s32.totalorder %s19, 1
      %p136 = por %p134, %p135
      %p138 = scmp.ne.s32.totalorder %s121, %s137
      %p139 = scmp.eq.s32.totalorder %s19, 0
      %p140 = por %p138, %p139
      %p141 = scmp.le.s32.totalorder 1, %s13
      %p142 = scmp.lt.s32.totalorder %s13, 3
      %p143 = pnand %p141, %p142
      %p144 = pneg %p143
      // Predicated region
      $region9: #{tpu_custom_call.1} parent=5 // pred_check
        _
      $region10: #{tpu_custom_call.1} parent=5 // pred_check_branch
        %146 = sbr.rel (%p143) target = $region12
      $region11: #{tpu_custom_call.1} parent=5 // pred_region
        %s147 = ssub.s32 %s13, 1
        // Predicated region
        $region13: #{tpu_custom_call.1} parent=11 // pred_check
          %p148 = pneg %p86
        $region14: #{tpu_custom_call.1} parent=11 // pred_check_branch
          %150 = sbr.rel (%p148) target = $region16
        $region15: #{tpu_custom_call.1} parent=11 // pred_region
          _
        $region16: #{tpu_custom_call.1} parent=11 // pred_fallthru
          _
        // Predicated region
        $region17: #{tpu_custom_call.1} parent=11 // pred_check
          %p151 = pneg %p107
        $region18: #{tpu_custom_call.1} parent=11 // pred_check_branch
          %153 = sbr.rel (%p151) target = $region20
        $region19: #{tpu_custom_call.1} parent=11 // pred_region
          _
        $region20: #{tpu_custom_call.1} parent=11 // pred_fallthru
          _
      $region12: #{tpu_custom_call.1} parent=5 // pred_fallthru
        _
      %p154 = scmp.lt.s32.totalorder %s13, 2
      // Predicated region
      $region21: #{tpu_custom_call.1} parent=5 // pred_check
        %p155 = pneg %p154
      $region22: #{tpu_custom_call.1} parent=5 // pred_check_branch
        %157 = sbr.rel (%p155) target = $region24
      $region23: #{tpu_custom_call.1} parent=5 // pred_region
        // Predicated region
        $region25: #{tpu_custom_call.1} parent=23 // pred_check
          %p158 = pneg %p33
        $region26: #{tpu_custom_call.1} parent=23 // pred_check_branch
          %160 = sbr.rel (%p158) target = $region28
        $region27: #{tpu_custom_call.1} parent=23 // pred_region
          %p161 = scmp.lt.s32.totalorder %s13, 1
          %s162 = scalar_select %p161, %s13, 1
          %s163 = smul.addr %s162, 8
          %s164 = scalar_lea.vmem %s0, %s163
        $region28: #{tpu_custom_call.1} parent=23 // pred_fallthru
          _
        // Predicated region
        $region29: #{tpu_custom_call.1} parent=23 // pred_check
          %p165 = pneg %p59
        $region30: #{tpu_custom_call.1} parent=23 // pred_check_branch
          %167 = sbr.rel (%p165) target = $region32
        $region31: #{tpu_custom_call.1} parent=23 // pred_region
          %p168 = scmp.lt.s32.totalorder %s13, 1
          %s169 = scalar_select %p168, %s13, 1
          %s170 = smul.addr %s169, 8
          %s171 = scalar_lea.vmem %s1, %s170
        $region32: #{tpu_custom_call.1} parent=23 // pred_fallthru
          _
      $region24: #{tpu_custom_call.1} parent=5 // pred_fallthru
        _
      %p172 = scmp.le.s32.totalorder 1, %s13
      %p173 = scmp.lt.s32.totalorder %s13, 3
      %p174 = pnand %p172, %p173
      %p175 = pneg %p174
      // Predicated region
      $region33: #{tpu_custom_call.1} parent=5 // pred_check
        _
      $region34: #{tpu_custom_call.1} parent=5 // pred_check_branch
        %177 = sbr.rel (%p174) target = $region36
      $region35: #{tpu_custom_call.1} parent=5 // pred_region
        %s178 = ssub.s32 %s13, 1
        %p179 = scmp.lt.s32.totalorder %s18, 1
        %s180 = scalar_select %p179, %s18, 1
        %s181 = smul.addr %s180, 8
        %s182 = scalar_lea.vmem %s0, %s181
        %p183 = pneg %p39
        %p184 = pneg %p36
        %p185 = scmp.lt.s32.totalorder %s18, 1
        %s186 = scalar_select %p185, %s18, 1
        %s187 = smul.addr %s186, 8
        %s188 = scalar_lea.vmem %s1, %s187
        %p189 = pneg %p65
        %p190 = pneg %p62
        %p191 = pneg %p86
        %p192 = pneg %p83
        %p193 = pneg %p107
        %p194 = pneg %p104
        %p195 = pneg %p133
        %p196 = pneg %p130
        %s197 = sand.u32 %s120, 1
        %s198 = scalar_lea.sflag [#allocation3], %s197
        %s199 = sand.u32 %s120, 1
        %s200 = smul.addr %s199, 8
        %s201 = scalar_lea.vmem [#allocation2], %s200
        %p202 = scmp.lt.s32.totalorder %s18, 1
        %s203 = scalar_select %p202, %s18, 1
        %s204 = smul.addr %s203, 8
        %s205 = scalar_lea.vmem %s0, %s204
        %p206 = scmp.lt.s32.totalorder %s18, 1
        %s207 = scalar_select %p206, %s18, 1
        %s208 = smul.addr %s207, 8
        %s209 = scalar_lea.vmem %s1, %s208
        %v210 = vld [vmem:[%s205] sm:$0xff]
        %v211 = vld [vmem:[%s2] sm:$0xff]
        %v212 = vld [vmem:[%s2 + $0x8] sm:$0xff]
        %v213 = vld [vmem:[%s2 + $0x10] sm:$0xff]
        %v214 = vld [vmem:[%s2 + $0x18] sm:$0xff]
        %v215 = vld [vmem:[%s209] sm:$0xff]
        %217 = vrot.lane.b32.xlu0 %v215, 96
        %v218 = vpop.permute.xlu0 %217
        %v220 = vadd.f32 %v215, %v218
        %221 = vrot.lane.b32.xlu0 %v215, 64
        %v222 = vpop.permute.xlu0 %221
        %v224 = vadd.f32 %v220, %v222
        %225 = vrot.lane.b32.xlu0 %v215, 32
        %v226 = vpop.permute.xlu0 %225
        %v228 = vadd.f32 %v224, %v226
        %v229 = vmul.f32 %v228, 0.25
        %v230 = vld [vmem:[%s2 + $0x20] sm:$0xff]
        %v231 = vld [vmem:[%s2 + $0x28] sm:$0xff]
        %v232 = vld [vmem:[%s2 + $0x30] sm:$0xff]
        %v233 = vld [vmem:[%s2 + $0x38] sm:$0xff]
        %vm234 = vcmask 261120
        %v236 = vsel %vm234, %v229, 0
        %238 = vmatpush.msra.mxu0 0.0
        %239 = vmatpush.msra.mxu0 0.0
        %240 = vmatpush.msra.mxu0 0.0
        %241 = vmatpush.msra.mxu0 0.0
        %242 = vmatpush.msra.mxu0 0.0
        %243 = vmatpush.msra.mxu0 0.0
        %244 = vmatpush.msra.mxu0 0.0
        %245 = vmatpush.msra.mxu0 0.0
        %246 = vmatpush.msra.mxu0 0.0
        %247 = vmatpush.msra.mxu0 0.0
        %248 = vmatpush.msra.mxu0 0.0
        %249 = vmatpush.msra.mxu0 0.0
        %250 = vmatpush.msra.mxu0 %v233
        %251 = vmatpush.msra.mxu0 %v232
        %252 = vmatpush.msra.mxu0 %v231
        %253 = vmatpush.msra.mxu0 %v230
        %254 = vmatmul.f32.gmra.mxu0 %v236
        %v255 = vpop.f32.mrf.mxu0
        %v256 = vadd.f32 0.0, %v255
        %257 = vdwg.mxu0
        %v259 = vsel %vm234, %v210, 0
        %261 = vmatpush.msra.mxu0 0.0
        %262 = vmatpush.msra.mxu0 0.0
        %263 = vmatpush.msra.mxu0 0.0
        %264 = vmatpush.msra.mxu0 0.0
        %265 = vmatpush.msra.mxu0 0.0
        %266 = vmatpush.msra.mxu0 0.0
        %267 = vmatpush.msra.mxu0 0.0
        %268 = vmatpush.msra.mxu0 0.0
        %269 = vmatpush.msra.mxu0 0.0
        %270 = vmatpush.msra.mxu0 0.0
        %271 = vmatpush.msra.mxu0 0.0
        %272 = vmatpush.msra.mxu0 0.0
        %273 = vmatpush.msra.mxu0 %v214
        %274 = vmatpush.msra.mxu0 %v213
        %275 = vmatpush.msra.mxu0 %v212
        %276 = vmatpush.msra.mxu0 %v211
        %277 = vmatmul.f32.gmra.mxu0 %v259
        %v278 = vpop.f32.mrf.mxu0
        %v279 = vadd.f32 %v256, %v278
        %280 = vdwg.mxu0
        %v281 = vld [vmem:[%s3] sm:$0x1]
        %v283 = vperm.slane %v281, 0
        %v285 = vadd.f32 %v279, %v283
        %286 = vst.msk [vmem:[%s201] sm:$0xff] %vm234, %v285
        %s287 = sand.u32 %s120, 1
        %s288 = scalar_lea.sflag [#allocation3], %s287
        %s289 = sand.u32 %s120, 1
        %s290 = smul.addr %s289, 8
        %s291 = scalar_lea.vmem [#allocation2], %s290
        // Predicated region
        $region37: #{tpu_custom_call.1} parent=35 // pred_check
          %p292 = pneg %p130
        $region38: #{tpu_custom_call.1} parent=35 // pred_check_branch
          %294 = sbr.rel (%p292) target = $region40
        $region39: #{tpu_custom_call.1} parent=35 // pred_region
          %296 = vsyncadd %s288, 0
          %s297 = smul.addr %s18, 8
          %s298 = scalar_lea.hbm %s4, %s297
          %s300 = sshll.u32 %s291, 4
          %s301 = int_to_ptr.vmem [resolvable:$true] %s300
          %s302 = sshll.u32 %s298, 4
          %s303 = int_to_ptr.hbm [resolvable:$true] %s302
          %305 = dma.vmem_to_hbm [thread:$0]  %s301, 128, %s303, %s288
        $region40: #{tpu_custom_call.1} parent=35 // pred_fallthru
          _
      $region36: #{tpu_custom_call.1} parent=5 // pred_fallthru
        _
      %p306 = scmp.le.s32.totalorder 2, %s13
      // Predicated region
      $region41: #{tpu_custom_call.1} parent=5 // pred_check
        %p307 = pneg %p306
      $region42: #{tpu_custom_call.1} parent=5 // pred_check_branch
        %309 = sbr.rel (%p307) target = $region44
      $region43: #{tpu_custom_call.1} parent=5 // pred_region
        %s310 = ssub.s32 %s13, 2
        // Predicated region
        $region45: #{tpu_custom_call.1} parent=43 // pred_check
          %p311 = pneg %p136
        $region46: #{tpu_custom_call.1} parent=43 // pred_check_branch
          %313 = sbr.rel (%p311) target = $region48
        $region47: #{tpu_custom_call.1} parent=43 // pred_region
          %s314 = sand.u32 %s121, 1
          %s315 = scalar_lea.sflag [#allocation3], %s314
          %s316 = sand.u32 %s121, 1
          %s317 = smul.addr %s316, 8
          %s318 = scalar_lea.vmem [#allocation2], %s317
          %320 = dma.done %s315, 128
        $region48: #{tpu_custom_call.1} parent=43 // pred_fallthru
          _
      $region44: #{tpu_custom_call.1} parent=5 // pred_fallthru
        _
    $region6: #{tpu_custom_call.1} parent=1 // loop_footer
      %s17 = sadd.s32 1, %s13
    $region7: #{tpu_custom_call.1} parent=1 // loop_footer_branch
      %12 = sbr.rel target = $region3
    $region8: #{tpu_custom_call.1} parent=1 // loop_exit
      _
    %321 = vsyncpa [#allocation3], 1
    %s322 = scalar_lea.sflag [#allocation3], 1
    %323 = vsyncpa %s322, 1

</llo_original>
